<compile_context>
chip_gen: v7x
topology: tpu7x:2x2x1
jax: 0.10.0
libtpu: 0.0.40
codegen_flags: <defaults>
</compile_context>

<pallas_src>
import functools

import jax
import jax.numpy as jnp
from jax import lax
from jax.experimental import pallas as pl
from jax.experimental.pallas import tpu as pltpu


def _round_up(x, m):
    return ((x + m - 1) // m) * m


def _conv_stats_kernel(p_ref, w_ref, z_ref, s_ref, *, cout_p8):
    """Pass 1: one MXU contraction per tile + BN partials + channel-major store.

    p_ref : [1, rows, KKCp]      im2col patches (mxu dtype, K padded to 128 lanes)
    w_ref : [KKCp, CPAD]         im2col weights, Cout zero-padded to 128 lanes
    z_ref : [1, cout_p8, rows]   conv output tile, channel-major (mxu dtype)
    s_ref : [1, 1, 2, CPAD]      per-tile (sum, sum-of-squares), f32
    """
    # Single MXU contraction, f32 accumulate.
    z = jnp.dot(p_ref[0], w_ref[...], preferred_element_type=jnp.float32)  # [rows, CPAD]

    # BN partials from the f32 accumulator (before any downcast); one [2, CPAD] store.
    s_ref[0, 0] = jnp.concatenate(
        [jnp.sum(z, axis=0, keepdims=True),
         jnp.sum(z * z, axis=0, keepdims=True)], axis=0)

    # Channel-major store: lanes = rows (lane-dense, unmasked vst), sublanes =
    # real channels only, so the z HBM round trip carries no 128-lane padding.
    z_ref[0] = z.T[:cout_p8].astype(z_ref.dtype)


def _bn_act_kernel(z_ref, scale_ref, shift_ref, o_ref, *, slope):
    """Pass 2: y = leaky_relu(z * scale + shift), channel-major, lane-dense.

    z_ref     : [1, cout_p8, tile_r]  (mxu dtype)
    scale_ref : [cout_p8, 1]          f32
    shift_ref : [cout_p8, 1]          f32
    o_ref     : [1, cout_p8, tile_r]  f32
    """
    y = z_ref[0].astype(jnp.float32) * scale_ref[...] + shift_ref[...]
    o_ref[0] = jnp.where(y > 0, y, slope * y).astype(o_ref.dtype)


def _pick_rows(r_total, bytes_per_row, *, max_rows=512, max_bytes=8 << 20):
    """Largest 128-multiple divisor of r_total inside the row/byte budget.

    A 128-multiple keeps every load/store in both passes unmasked; the budget
    keeps per-step blocks well inside the scoped VMEM limit (v7x-safe).
    """
    cands = [r for r in range(128, r_total + 1, 128) if r_total % r == 0]
    if not cands:
        return r_total  # single full block (full-dim blocks are exempt from 8/128 rule)
    fit = [r for r in cands if r <= max_rows and r * bytes_per_row <= max_bytes]
    return max(fit) if fit else min(cands)


def _vmem_limit_bytes():
    """~half of physical VMEM: ~64 MiB on v5e/v6e (128 MiB), ~32 MiB on v7x (64 MiB)."""
    try:
        cap = int(pltpu.get_tpu_info().vmem_capacity_bytes)
    except Exception:
        cap = 128 * 1024 * 1024
    return max(32 * 1024 * 1024, min(cap // 2, 96 * 1024 * 1024))


def conv_block(x_nchw, weight_oihw, bias, gamma, beta, *,
               stride=1, padding=1, eps=1e-5, slope=0.1,
               mxu_dtype=jnp.bfloat16):
    """Equivalent of ConvBlock.forward (training-mode BatchNorm).

    x_nchw      : [N, Cin, H, W]
    weight_oihw : [Cout, Cin, KH, KW]   (PyTorch Conv2d layout)
    bias        : [Cout]  (accepted for API parity; cancelled exactly by batch-stat BN)
    gamma, beta : [Cout]
    returns     : [N, Cout, Ho, Wo] float32
    """
    n, cin, h, w = x_nchw.shape
    cout, _, kh, kw = weight_oihw.shape
    h_out = (h + 2 * padding - kh) // stride + 1
    w_out = (w + 2 * padding - kw) // stride + 1
    r_total = h_out * w_out
    kkc = kh * kw * cin
    kkc_p = _round_up(kkc, 128)
    cpad = _round_up(cout, 128)
    cout_p8 = _round_up(cout, 8)

    # Training-mode BN subtracts the per-channel batch mean, which absorbs a
    # constant per-channel conv bias exactly -> skip the bias add entirely.
    del bias

    # ---- Layout glue (wrapper): lane-dense im2col in the MXU dtype ---------
    # Patches are [N, Ho*Wo, KH*KW*Cin] with (kh, kw, cin) fastest-varying, then
    # zero-padded to 128 lanes so pass 1's MXU LHS needs no in-kernel tap scatter.
    # TODO(synk): for large KH*KW*Cin (>~512) switch to an in-kernel row-halo
    # im2col (pl.ANY + make_async_copy) to avoid the KH*KW x HBM read blowup,
    # and chain ConvBlocks in this layout so the NCHW glue is paid only once.
    x_nhwc = jnp.transpose(x_nchw, (0, 2, 3, 1)).astype(mxu_dtype)
    x_pad = jnp.pad(x_nhwc, ((0, 0), (padding, padding), (padding, padding), (0, 0)))
    taps = []
    for dkh in range(kh):
        for dkw in range(kw):
            taps.append(lax.slice(
                x_pad,
                (0, dkh, dkw, 0),
                (n, dkh + (h_out - 1) * stride + 1,
                 dkw + (w_out - 1) * stride + 1, cin),
                (1, stride, stride, 1)))                      # [N, Ho, Wo, Cin]
    patches = jnp.concatenate(taps, axis=-1).reshape(n, r_total, kkc)
    patches = jnp.pad(patches, ((0, 0), (0, 0), (0, kkc_p - kkc)))

    w2 = jnp.transpose(weight_oihw, (2, 3, 1, 0)).reshape(kkc, cout)
    w2 = jnp.pad(w2, ((0, kkc_p - kkc), (0, cpad - cout))).astype(mxu_dtype)

    elem = jnp.dtype(mxu_dtype).itemsize
    rows = _pick_rows(r_total, kkc_p * elem)
    n_rt = r_total // rows
    vmem_limit = _vmem_limit_bytes()

    # ---- Pass 1: conv (single MXU contraction) + per-tile BN partials ------
    kernel1 = functools.partial(_conv_stats_kernel, cout_p8=cout_p8)
    z, stats = pl.pallas_call(
        kernel1,
        out_shape=(jax.ShapeDtypeStruct((n, cout_p8, r_total), mxu_dtype),
                   jax.ShapeDtypeStruct((n, n_rt, 2, cpad), jnp.float32)),
        grid=(n, n_rt),
        in_specs=[
            pl.BlockSpec((1, rows, kkc_p), lambda b, t: (b, t, 0)),
            # Constant-index weight block (tiny here).
            # TODO(synk): single-buffer it (pipeline_mode=pl.Buffered(1)) for
            # production-size KKCp x CPAD weights to save VMEM on v7x.
            pl.BlockSpec((kkc_p, cpad), lambda b, t: (0, 0)),
        ],
        out_specs=(
            pl.BlockSpec((1, cout_p8, rows), lambda b, t: (b, 0, t)),
            pl.BlockSpec((1, 1, 2, cpad), lambda b, t: (b, t, 0, 0)),
        ),
        compiler_params=pltpu.CompilerParams(
            dimension_semantics=("parallel", "parallel"),
            vmem_limit_bytes=vmem_limit),
    )(patches, w2)

    # ---- Finalize BN statistics (tiny per-channel math, wrapper-side) ------
    cnt = jnp.float32(n * r_total)
    ssum = jnp.sum(stats[:, :, 0, :cout], axis=(0, 1))
    ssq = jnp.sum(stats[:, :, 1, :cout], axis=(0, 1))
    mean = ssum / cnt
    # Single-pass E[x^2]-E[x]^2 in f32 from the f32 accumulator; clamp >= 0.
    var = jnp.maximum(ssq / cnt - mean * mean, 0.0)           # biased batch variance
    inv = lax.rsqrt(var + eps)
    g32 = gamma.astype(jnp.float32)
    b32 = beta.astype(jnp.float32)
    scale = jnp.pad(g32 * inv, (0, cout_p8 - cout)).reshape(cout_p8, 1)
    shift = jnp.pad(b32 - mean * g32 * inv, (0, cout_p8 - cout)).reshape(cout_p8, 1)

    # ---- Pass 2: normalize + LeakyReLU (channel-major, lane-dense) ---------
    tile_r = _pick_rows(r_total, cout_p8 * (elem + 4))
    n_t2 = r_total // tile_r
    kernel2 = functools.partial(_bn_act_kernel, slope=slope)
    y = pl.pallas_call(
        kernel2,
        out_shape=jax.ShapeDtypeStruct((n, cout_p8, r_total), jnp.float32),
        grid=(n, n_t2),
        in_specs=[
            pl.BlockSpec((1, cout_p8, tile_r), lambda b, t: (b, 0, t)),
            pl.BlockSpec((cout_p8, 1), lambda b, t: (0, 0)),
            pl.BlockSpec((cout_p8, 1), lambda b, t: (0, 0)),
        ],
        out_specs=pl.BlockSpec((1, cout_p8, tile_r), lambda b, t: (b, 0, t)),
        compiler_params=pltpu.CompilerParams(
            dimension_semantics=("parallel", "parallel"),
            vmem_limit_bytes=vmem_limit),
    )(z, scale, shift)

    # [N, cout_p8, Ho*Wo] -> [N, Cout, Ho, Wo]: channel slice + reshape only.
    return y[:, :cout, :].reshape(n, cout, h_out, w_out)


def _reference(x_nchw, weight_oihw, bias, gamma, beta, *,
               stride=1, padding=1, eps=1e-5, slope=0.1):
    """Pure-JAX reference (includes the conv bias; it cancels under batch-stat BN)."""
    y = lax.conv_general_dilated(
        x_nchw.astype(jnp.float32), weight_oihw.astype(jnp.float32),
        window_strides=(stride, stride),
        padding=[(padding, padding), (padding, padding)],
        dimension_numbers=("NCHW", "OIHW", "NCHW"),
        precision=lax.Precision.HIGHEST,
    ) + bias.reshape(1, -1, 1, 1)
    mean = jnp.mean(y, axis=(0, 2, 3), keepdims=True)
    var = jnp.mean((y - mean) ** 2, axis=(0, 2, 3), keepdims=True)
    yhat = (y - mean) * lax.rsqrt(var + eps)
    ybn = gamma.reshape(1, -1, 1, 1) * yhat + beta.reshape(1, -1, 1, 1)
    return jnp.where(ybn > 0, ybn, slope * ybn)


if __name__ == "__main__":
    # ConvBlock(in_channels=4, out_channels=8, kernel_size=3, stride=1, padding=1)
    N, CIN, H, W = 2, 4, 16, 16
    COUT, K, STRIDE, PAD = 8, 3, 1, 1

    key = jax.random.PRNGKey(0)
    kx, kw_, kb, kg, kbe = jax.random.split(key, 5)
    x = jax.random.normal(kx, (N, CIN, H, W), dtype=jnp.float32)
    weight = jax.random.normal(kw_, (COUT, CIN, K, K), dtype=jnp.float32) * 0.1
    bias = jax.random.normal(kb, (COUT,), dtype=jnp.float32) * 0.1
    gamma = 1.0 + 0.1 * jax.random.normal(kg, (COUT,), dtype=jnp.float32)
    beta = 0.1 * jax.random.normal(kbe, (COUT,), dtype=jnp.float32)

    ref = jax.block_until_ready(
        _reference(x, weight, bias, gamma, beta, stride=STRIDE, padding=PAD))

    # bf16 MXU + bf16 z intermediate (fast path): loose tolerance vs f32 reference.
    out_bf16 = jax.block_until_ready(
        conv_block(x, weight, bias, gamma, beta, stride=STRIDE, padding=PAD,
                   mxu_dtype=jnp.bfloat16))
    assert out_bf16.shape == (N, COUT, H, W), out_bf16.shape
    assert jnp.allclose(out_bf16, ref, rtol=5e-2, atol=5e-2), \
        float(jnp.max(jnp.abs(out_bf16 - ref)))

    # f32 MXU + f32 z intermediate: tight tolerance vs the f32 reference.
    out_f32 = jax.block_until_ready(
        conv_block(x, weight, bias, gamma, beta, stride=STRIDE, padding=PAD,
                   mxu_dtype=jnp.float32))
    assert out_f32.shape == (N, COUT, H, W), out_f32.shape
    assert jnp.allclose(out_f32, ref, rtol=1e-3, atol=1e-3), \
        float(jnp.max(jnp.abs(out_f32 - ref)))

    print("KERNEL_OK")
</pallas_src>

<mosaic_0001>
module attributes {stable_mosaic.version = 11 : i64} {
  func.func @_conv_stats_kernel(%arg0: i32, %arg1: i32, %arg2: memref<1x256x128xbf16, #tpu.memory_space<vmem>>, %arg3: memref<128x128xbf16, #tpu.memory_space<vmem>>, %arg4: memref<1x8x256xbf16, #tpu.memory_space<vmem>>, %arg5: memref<1x1x2x128xf32, #tpu.memory_space<vmem>>) attributes {dimension_semantics = [#tpu.dimension_semantics<parallel>, #tpu.dimension_semantics<parallel>], iteration_bounds = array<i64: 2, 1>, scalar_prefetch = 0 : i64, scratch_operands = 0 : i64, tpu.core_type = #tpu.core_type<tc>, window_params = [{transform_indices = @transform_0, window_bounds = array<i64: 1, 256, 128>}, {pipeline_mode = #tpu.pipeline_mode<synchronous>, transform_indices = @transform_1, window_bounds = array<i64: 128, 128>}, {transform_indices = @transform_2, window_bounds = array<i64: 1, 8, 256>}, {transform_indices = @transform_3, window_bounds = array<i64: 1, 1, 2, 128>}]} {
    %c0 = arith.constant 0 : index
    %c0_0 = arith.constant 0 : index
    %c0_1 = arith.constant 0 : index
    %0 = vector.load %arg2[%c0, %c0_0, %c0_1] : memref<1x256x128xbf16, #tpu.memory_space<vmem>>, vector<1x256x128xbf16>
    %1 = vector.shape_cast %0 : vector<1x256x128xbf16> to vector<256x128xbf16>
    %c0_2 = arith.constant 0 : index
    %c0_3 = arith.constant 0 : index
    %2 = vector.load %arg3[%c0_2, %c0_3] : memref<128x128xbf16, #tpu.memory_space<vmem>>, vector<128x128xbf16>
    %cst = arith.constant dense<0.000000e+00> : vector<256x128xf32>
    %3 = tpu.matmul %1, %2, %cst {dimension_numbers = #tpu.dot_dimension_numbers<[1], [0], [0], [1], [0, 0, 1, 1], [], []>} : vector<256x128xbf16>, vector<128x128xbf16>, vector<256x128xf32> -> vector<256x128xf32>
    %cst_4 = arith.constant dense<0.000000e+00> : vector<128xf32>
    %4 = vector.multi_reduction <add>, %3, %cst_4 [0] : vector<256x128xf32> to vector<128xf32>
    %5 = vector.shape_cast %4 : vector<128xf32> to vector<1x128xf32>
    %6 = arith.mulf %3, %3 : vector<256x128xf32>
    %cst_5 = arith.constant dense<0.000000e+00> : vector<128xf32>
    %7 = vector.multi_reduction <add>, %6, %cst_5 [0] : vector<256x128xf32> to vector<128xf32>
    %8 = vector.shape_cast %7 : vector<128xf32> to vector<1x128xf32>
    %9 = tpu.concatenate %5, %8 in 0 : vector<1x128xf32>, vector<1x128xf32> -> vector<2x128xf32>
    %c0_6 = arith.constant 0 : index
    %c0_7 = arith.constant 0 : index
    %c0_8 = arith.constant 0 : index
    %c0_9 = arith.constant 0 : index
    %10 = vector.load %arg5[%c0_6, %c0_7, %c0_8, %c0_9] : memref<1x1x2x128xf32, #tpu.memory_space<vmem>>, vector<1x1x2x128xf32>
    %11 = vector.shape_cast %10 : vector<1x1x2x128xf32> to vector<2x128xf32>
    %12 = vector.shape_cast %9 : vector<2x128xf32> to vector<1x1x2x128xf32>
    tpu.vector_store %arg5[%c0_6, %c0_7, %c0_8, %c0_9], %12 {strides = array<i32>} : memref<1x1x2x128xf32, #tpu.memory_space<vmem>>, vector<1x1x2x128xf32>,
    %13 = tpu.transpose %3, [1, 0] : vector<256x128xf32> -> vector<128x256xf32>
    %14 = vector.extract_strided_slice %13 {offsets = [0, 0], sizes = [8, 256], strides = [1, 1]} : vector<128x256xf32> to vector<8x256xf32>
    %15 = arith.truncf %14 : vector<8x256xf32> to vector<8x256xbf16>
    %c0_10 = arith.constant 0 : index
    %c0_11 = arith.constant 0 : index
    %c0_12 = arith.constant 0 : index
    %16 = vector.load %arg4[%c0_10, %c0_11, %c0_12] : memref<1x8x256xbf16, #tpu.memory_space<vmem>>, vector<1x8x256xbf16>
    %17 = vector.shape_cast %16 : vector<1x8x256xbf16> to vector<8x256xbf16>
    %18 = vector.shape_cast %15 : vector<8x256xbf16> to vector<1x8x256xbf16>
    tpu.vector_store %arg4[%c0_10, %c0_11, %c0_12], %18 {strides = array<i32>} : memref<1x8x256xbf16, #tpu.memory_space<vmem>>, vector<1x8x256xbf16>,
    return
  }
  func.func @transform_0(%arg0: i32, %arg1: i32) -> (i32, i32, i32) {
    %c0_i32 = arith.constant 0 : i32
    %c0_i32_0 = arith.constant 0 : i32
    return %arg0, %arg1, %c0_i32 : i32, i32, i32
  }
  func.func @transform_1(%arg0: i32, %arg1: i32) -> (i32, i32) {
    %c0_i32 = arith.constant 0 : i32
    %c0_i32_0 = arith.constant 0 : i32
    %c0_i32_1 = arith.constant 0 : i32
    return %c0_i32, %c0_i32_0 : i32, i32
  }
  func.func @transform_2(%arg0: i32, %arg1: i32) -> (i32, i32, i32) {
    %c0_i32 = arith.constant 0 : i32
    %c0_i32_0 = arith.constant 0 : i32
    return %arg0, %c0_i32, %arg1 : i32, i32, i32
  }
  func.func @transform_3(%arg0: i32, %arg1: i32) -> (i32, i32, i32, i32) {
    %c0_i32 = arith.constant 0 : i32
    %c0_i32_0 = arith.constant 0 : i32
    %c0_i32_1 = arith.constant 0 : i32
    return %arg0, %arg1, %c0_i32, %c0_i32_0 : i32, i32, i32, i32
  }
}

</mosaic_0001>

<llo_original>
// kernel: tpu_custom_call.1
$region0: #{tpu_custom_call.1}
  #allocation0 [shape = 'u32[]', space=smem, size = 0x4, offset = 0x4, fixed_abs, tag = 'smem constant byte address 0x4 - core index']
  #allocation1 [shape = 'u32[144,128]{1,0:T(1,128)}', space=vmem, size = 0x12000, scoped, tag = 'internal scratch']
  %s0 = inlined_call_operand.hbm [shape: bf16[2,256,128], index: 0, kind: input, shape index: {}]
  %s1 = inlined_call_operand.hbm [shape: bf16[128,128], index: 1, kind: input, shape index: {}]
  %s2 = inlined_call_operand.hbm [shape: bf16[2,8,256], index: 2, kind: output, shape index: {0}]
  %s3 = inlined_call_operand.hbm [shape: f32[2,1,2,128], index: 3, kind: output, shape index: {1}]
  %4 = xla_tuple %s2, %s3
  %s5 = sld [smem:[#allocation0]]
  $region57: #{tpu_custom_call.1} parent=0
    _
  %s7 = ssub.s32 1, %s5
  %s8 = scalar_select 0, %s7, %s5
  $region1: #{tpu_custom_call.1} parent=0
    #allocation2 [shape = 'u8[131072]{0}', space=vmem, size = 0x20000, scoped, tag = 'input window, operand 0']
    #allocation3 [shape = 's32[2]{0}', space=sflag, size = 0x8, scoped, tag = 'scoped memory for tpu_custom_call.1']
    #allocation4 [shape = 's32[2]{0}', space=sflag, size = 0x8, scoped, tag = 'scoped memory for tpu_custom_call.1']
    #allocation5 [shape = 'u8[32768]{0}', space=vmem, size = 0x8000, scoped, tag = 'input window, operand 1, single buffered']
    #allocation6 [shape = 's32[1]{0}', space=sflag, size = 0x4, scoped, tag = 'scoped memory for tpu_custom_call.1']
    #allocation7 [shape = 'u8[8192]{0}', space=vmem, size = 0x2000, scoped, tag = 'output window, operand 0']
    #allocation8 [shape = 'u8[2048]{0}', space=vmem, size = 0x800, scoped, tag = 'output window, operand 1']
    #allocation9 [shape = 's32[2]{0}', space=sflag, size = 0x8, scoped, tag = 'scoped memory for tpu_custom_call.1']
    %9 = vsyncpa [#allocation3], 0
    %s10 = scalar_lea.sflag [#allocation3], 1
    %11 = vsyncpa %s10, 0
    %12 = vsyncpa [#allocation6], 0
    %13 = vsyncpa [#allocation4], 0
    %s14 = scalar_lea.sflag [#allocation4], 1
    %15 = vsyncpa %s14, 0
    %16 = vsyncpa [#allocation9], 0
    %s17 = scalar_lea.sflag [#allocation9], 1
    %18 = vsyncpa %s17, 0
    loop: start=0, step=1, limit=4
    $region2: #{tpu_custom_call.1} parent=1 // loop_pre_header
      _
    $region3: #{tpu_custom_call.1} parent=1 // loop_header
      %s20 = sphi 0, %s24
      %p21 = scmp.ge.s32.totalorder %s20, 4
      %s27 = sphi 0, %s39
      %s28 = sphi 0, %s35
      %s29 = sphi 0, %s27
      %s30 = sphi 0, %s28
      %s31 = sphi 0, %s29
      %s32 = sphi 0, %s30
      %s44 = sphi 0, %s46
      %s47 = sphi 0, %s44
      %s48 = sphi 0, %s47
      %s64 = sphi 0, %s48
      %s68 = sphi 0, %s68
      %s70 = sphi 0, %s68
      %s71 = sphi 0, %s70
      %s85 = sphi 0, %s71
      %s93 = sphi 0, %s95
      %s96 = sphi 0, %s93
      %s97 = sphi 0, %s96
      %s113 = sphi 0, %s97
      %s121 = sphi 0, %s123
      %s124 = sphi 0, %s121
      %s125 = sphi 0, %s124
      %s141 = sphi 0, %s125
    $region4: #{tpu_custom_call.1} parent=1 // loop_header_branch
      %23 = sbr.rel (%p21) target = $region8
    $region5: #{tpu_custom_call.1} parent=1 // loop_body
      %s25 = ssub.s32 %s20, 1
      %s26 = ssub.s32 %s20, 2
      %s33 = sadd.s32 1, %s28
      %p34 = scmp.ge.s32.totalorder %s33, 1
      %s35 = scalar_select %p34, 0, %s33
      %s36 = sadd.s32 1, %s27
      %s37 = scalar_select %p34, %s36, %s27
      %p38 = scmp.ge.s32.totalorder %s37, 2
      %s39 = scalar_select %p38, 0, %s37
      %s40 = ssub.s32 %s27, %s39
      %s41 = ssub.s32 %s28, %s35
      %s42 = sor.u32 %s40, %s41
      %p43 = scmp.eq.s32.totalorder %s42, 0
      %s45 = sadd.s32 %s44, 1
      %s46 = scalar_select %p43, %s44, %s45
      %p49 = pneg %p43
      %p50 = scmp.eq.s32.totalorder %s20, 1
      %p51 = por %p49, %p50
      %p52 = scmp.ne.s32.totalorder %s44, %s47
      %p53 = scmp.eq.s32.totalorder %s20, 0
      %p54 = por %p52, %p53
      %p55 = scmp.ne.s32.totalorder %s44, %s47
      %p56 = scmp.eq.s32.totalorder %s25, 1
      %p57 = por %p55, %p56
      %p58 = scmp.ne.s32.totalorder %s47, %s48
      %p59 = scmp.eq.s32.totalorder %s25, 0
      %p60 = por %p58, %p59
      %p61 = scmp.ne.s32.totalorder %s47, %s48
      %p62 = scmp.eq.s32.totalorder %s26, 1
      %p63 = por %p61, %p62
      %p65 = scmp.ne.s32.totalorder %s48, %s64
      %p66 = scmp.eq.s32.totalorder %s26, 0
      %p67 = por %p65, %p66
      %s69 = sadd.s32 %s68, 1
      %p72 = scmp.eq.s32.totalorder %s20, 1
      %p73 = scmp.ne.s32.totalorder %s68, %s70
      %p74 = scmp.eq.s32.totalorder %s20, 0
      %p75 = por %p73, %p74
      %p76 = scmp.ne.s32.totalorder %s68, %s70
      %p77 = scmp.eq.s32.totalorder %s25, 1
      %p78 = por %p76, %p77
      %p79 = scmp.ne.s32.totalorder %s70, %s71
      %p80 = scmp.eq.s32.totalorder %s25, 0
      %p81 = por %p79, %p80
      %p82 = scmp.ne.s32.totalorder %s70, %s71
      %p83 = scmp.eq.s32.totalorder %s26, 1
      %p84 = por %p82, %p83
      %p86 = scmp.ne.s32.totalorder %s71, %s85
      %p87 = scmp.eq.s32.totalorder %s26, 0
      %p88 = por %p86, %p87
      %s89 = ssub.s32 %s27, %s39
      %s90 = ssub.s32 %s28, %s35
      %s91 = sor.u32 %s89, %s90
      %p92 = scmp.eq.s32.totalorder %s91, 0
      %s94 = sadd.s32 %s93, 1
      %s95 = scalar_select %p92, %s93, %s94
      %p98 = pneg %p92
      %p99 = scmp.eq.s32.totalorder %s20, 1
      %p100 = por %p98, %p99
      %p101 = scmp.ne.s32.totalorder %s93, %s96
      %p102 = scmp.eq.s32.totalorder %s20, 0
      %p103 = por %p101, %p102
      %p104 = scmp.ne.s32.totalorder %s93, %s96
      %p105 = scmp.eq.s32.totalorder %s25, 1
      %p106 = por %p104, %p105
      %p107 = scmp.ne.s32.totalorder %s96, %s97
      %p108 = scmp.eq.s32.totalorder %s25, 0
      %p109 = por %p107, %p108
      %p110 = scmp.ne.s32.totalorder %s96, %s97
      %p111 = scmp.eq.s32.totalorder %s26, 1
      %p112 = por %p110, %p111
      %p114 = scmp.ne.s32.totalorder %s97, %s113
      %p115 = scmp.eq.s32.totalorder %s26, 0
      %p116 = por %p114, %p115
      %s117 = ssub.s32 %s27, %s39
      %s118 = ssub.s32 %s28, %s35
      %s119 = sor.u32 %s117, %s118
      %p120 = scmp.eq.s32.totalorder %s119, 0
      %s122 = sadd.s32 %s121, 1
      %s123 = scalar_select %p120, %s121, %s122
      %p126 = pneg %p120
      %p127 = scmp.eq.s32.totalorder %s20, 1
      %p128 = por %p126, %p127
      %p129 = scmp.ne.s32.totalorder %s121, %s124
      %p130 = scmp.eq.s32.totalorder %s20, 0
      %p131 = por %p129, %p130
      %p132 = scmp.ne.s32.totalorder %s121, %s124
      %p133 = scmp.eq.s32.totalorder %s25, 1
      %p134 = por %p132, %p133
      %p135 = scmp.ne.s32.totalorder %s124, %s125
      %p136 = scmp.eq.s32.totalorder %s25, 0
      %p137 = por %p135, %p136
      %p138 = scmp.ne.s32.totalorder %s124, %s125
      %p139 = scmp.eq.s32.totalorder %s26, 1
      %p140 = por %p138, %p139
      %p142 = scmp.ne.s32.totalorder %s125, %s141
      %p143 = scmp.eq.s32.totalorder %s26, 0
      %p144 = por %p142, %p143
      %p145 = scmp.le.s32.totalorder 1, %s20
      %p146 = scmp.lt.s32.totalorder %s20, 3
      %p147 = pnand %p145, %p146
      %p148 = pneg %p147
      // Predicated region
      $region9: #{tpu_custom_call.1} parent=5 // pred_check
        _
      $region10: #{tpu_custom_call.1} parent=5 // pred_check_branch
        %150 = sbr.rel (%p147) target = $region12
      $region11: #{tpu_custom_call.1} parent=5 // pred_region
        %s151 = ssub.s32 %s20, 1
        // Predicated region
        $region13: #{tpu_custom_call.1} parent=11 // pred_check
          %p152 = pneg %p81
        $region14: #{tpu_custom_call.1} parent=11 // pred_check_branch
          %154 = sbr.rel (%p152) target = $region16
        $region15: #{tpu_custom_call.1} parent=11 // pred_region
          %s156 = ssub.s32 1024, 1024
          %157 = vsyncadd [#allocation6], %s156
          %s158 = sshll.u32 [#allocation5], 4
          %s159 = int_to_ptr.vmem [resolvable:$true] %s158
          %164 = dma.hbm_to_vmem [thread:$0]  %s1, 1024, %s159, [#allocation6], 64, 64, 4
        $region16: #{tpu_custom_call.1} parent=11 // pred_fallthru
          _
      $region12: #{tpu_custom_call.1} parent=5 // pred_fallthru
        _
      %p165 = scmp.lt.s32.totalorder %s20, 2
      // Predicated region
      $region17: #{tpu_custom_call.1} parent=5 // pred_check
        %p166 = pneg %p165
      $region18: #{tpu_custom_call.1} parent=5 // pred_check_branch
        %168 = sbr.rel (%p166) target = $region20
      $region19: #{tpu_custom_call.1} parent=5 // pred_region
        // Predicated region
        $region21: #{tpu_custom_call.1} parent=19 // pred_check
          %p169 = pneg %p54
        $region22: #{tpu_custom_call.1} parent=19 // pred_check_branch
          %171 = sbr.rel (%p169) target = $region24
        $region23: #{tpu_custom_call.1} parent=19 // pred_region
          %s172 = sand.u32 %s44, 1
          %s173 = scalar_lea.sflag [#allocation3], %s172
          %s174 = sand.u32 %s44, 1
          %s175 = smul.addr %s174, 128
          %s176 = scalar_lea.vmem [#allocation2], %s175
          %s177 = smul.u32 32, %s28
          %s179 = ssub.s32 2048, 2048
          %180 = vsyncadd %s173, %s179
          %s181 = smul.addr %s27, 32
          %s182 = sadd.s32 %s177, %s181
          %s183 = smul.addr %s182, 64
          %s184 = scalar_lea.hbm %s0, %s183
          %s185 = sshll.u32 %s176, 4
          %s186 = int_to_ptr.vmem [resolvable:$true] %s185
          %191 = dma.hbm_to_vmem [thread:$0]  %s184, 2048, %s186, %s173, 64, 64, 4
        $region24: #{tpu_custom_call.1} parent=19 // pred_fallthru
          _
      $region20: #{tpu_custom_call.1} parent=5 // pred_fallthru
        _
      %p192 = scmp.le.s32.totalorder 1, %s20
      %p193 = scmp.lt.s32.totalorder %s20, 3
      %p194 = pnand %p192, %p193
      %p195 = pneg %p194
      // Predicated region
      $region25: #{tpu_custom_call.1} parent=5 // pred_check
        _
      $region26: #{tpu_custom_call.1} parent=5 // pred_check_branch
        %197 = sbr.rel (%p194) target = $region28
      $region27: #{tpu_custom_call.1} parent=5 // pred_region
        %s198 = ssub.s32 %s20, 1
        %s199 = sand.u32 %s47, 1
        %s200 = scalar_lea.sflag [#allocation3], %s199
        %s201 = sand.u32 %s47, 1
        %s202 = smul.addr %s201, 128
        %s203 = scalar_lea.vmem [#allocation2], %s202
        // Predicated region
        $region29: #{tpu_custom_call.1} parent=27 // pred_check
          %p204 = pneg %p60
        $region30: #{tpu_custom_call.1} parent=27 // pred_check_branch
          %206 = sbr.rel (%p204) target = $region32
        $region31: #{tpu_custom_call.1} parent=27 // pred_region
          %207 = dma.done %s200, 2048
        $region32: #{tpu_custom_call.1} parent=27 // pred_fallthru
          _
        // Predicated region
        $region33: #{tpu_custom_call.1} parent=27 // pred_check
          %p208 = pneg %p81
        $region34: #{tpu_custom_call.1} parent=27 // pred_check_branch
          %210 = sbr.rel (%p208) target = $region36
        $region35: #{tpu_custom_call.1} parent=27 // pred_region
          %211 = dma.done [#allocation6], 1024
        $region36: #{tpu_custom_call.1} parent=27 // pred_fallthru
          _
        %s212 = sand.u32 %s47, 1
        %s213 = scalar_lea.sflag [#allocation3], %s212
        %s214 = sand.u32 %s47, 1
        %s215 = smul.addr %s214, 128
        %s216 = scalar_lea.vmem [#allocation2], %s215
        %p217 = pneg %p60
        %p218 = pneg %p57
        %p219 = pneg %p81
        %p220 = pneg %p78
        %p221 = pneg %p109
        %p222 = pneg %p106
        %s223 = sand.u32 %s96, 1
        %s224 = scalar_lea.sflag [#allocation4], %s223
        %s225 = sand.u32 %s96, 1
        %s226 = smul.addr %s225, 8
        %s227 = scalar_lea.vmem [#allocation7], %s226
        %p228 = pneg %p137
        %p229 = pneg %p134
        %s230 = sand.u32 %s124, 1
        %s231 = scalar_lea.sflag [#allocation9], %s230
        %s232 = sand.u32 %s124, 1
        %s233 = smul.addr %s232, 2
        %s234 = scalar_lea.vmem [#allocation8], %s233
        %s235 = smul.u32 32, %s30
        %s236 = smul.u32 2, %s30
        %v238 = vld [vmem:[%s203] sm:$0xf]
        %v239 = vld [vmem:[%s203 + $0x4] sm:$0xf]
        %v240 = vld [vmem:[%s203 + $0x8] sm:$0xf]
        %v241 = vld [vmem:[%s203 + $0xc] sm:$0xf]
        %v242 = vld [vmem:[%s203 + $0x10] sm:$0xf]
        %v243 = vld [vmem:[%s203 + $0x14] sm:$0xf]
        %v244 = vld [vmem:[%s203 + $0x18] sm:$0xf]
        %v245 = vld [vmem:[%s203 + $0x1c] sm:$0xf]
        %v246 = vld [vmem:[%s203 + $0x20] sm:$0xf]
        %v247 = vld [vmem:[%s203 + $0x24] sm:$0xf]
        %v248 = vld [vmem:[%s203 + $0x28] sm:$0xf]
        %v249 = vld [vmem:[%s203 + $0x2c] sm:$0xf]
        %v250 = vld [vmem:[%s203 + $0x30] sm:$0xf]
        %v251 = vld [vmem:[%s203 + $0x34] sm:$0xf]
        %v252 = vld [vmem:[%s203 + $0x38] sm:$0xf]
        %v253 = vld [vmem:[%s203 + $0x3c] sm:$0xf]
        %v254 = vld [vmem:[%s203 + $0x40] sm:$0xf]
        %v255 = vld [vmem:[%s203 + $0x44] sm:$0xf]
        %v256 = vld [vmem:[%s203 + $0x48] sm:$0xf]
        %v257 = vld [vmem:[%s203 + $0x4c] sm:$0xf]
        %v258 = vld [vmem:[%s203 + $0x50] sm:$0xf]
        %v259 = vld [vmem:[%s203 + $0x54] sm:$0xf]
        %v260 = vld [vmem:[%s203 + $0x58] sm:$0xf]
        %v261 = vld [vmem:[%s203 + $0x5c] sm:$0xf]
        %v262 = vld [vmem:[%s203 + $0x60] sm:$0xf]
        %v263 = vld [vmem:[%s203 + $0x64] sm:$0xf]
        %v264 = vld [vmem:[%s203 + $0x68] sm:$0xf]
        %v265 = vld [vmem:[%s203 + $0x6c] sm:$0xf]
        %v266 = vld [vmem:[%s203 + $0x70] sm:$0xf]
        %v267 = vld [vmem:[%s203 + $0x74] sm:$0xf]
        %v268 = vld [vmem:[%s203 + $0x78] sm:$0xf]
        %v269 = vld [vmem:[%s203 + $0x7c] sm:$0xf]
        %v270 = vld [vmem:[#allocation5] sm:$0xf]
        %v271 = vld [vmem:[#allocation5 + $0x4] sm:$0xf]
        %v272 = vld [vmem:[#allocation5 + $0x8] sm:$0xf]
        %v273 = vld [vmem:[#allocation5 + $0xc] sm:$0xf]
        %v274 = vld [vmem:[#allocation5 + $0x10] sm:$0xf]
        %v275 = vld [vmem:[#allocation5 + $0x14] sm:$0xf]
        %v276 = vld [vmem:[#allocation5 + $0x18] sm:$0xf]
        %v277 = vld [vmem:[#allocation5 + $0x1c] sm:$0xf]
        %v278 = vld [vmem:[#allocation5 + $0x20] sm:$0xf]
        %v279 = vld [vmem:[#allocation5 + $0x24] sm:$0xf]
        %v280 = vld [vmem:[#allocation5 + $0x28] sm:$0xf]
        %v281 = vld [vmem:[#allocation5 + $0x2c] sm:$0xf]
        %v282 = vld [vmem:[#allocation5 + $0x30] sm:$0xf]
        %v283 = vld [vmem:[#allocation5 + $0x34] sm:$0xf]
        %v284 = vld [vmem:[#allocation5 + $0x38] sm:$0xf]
        %v285 = vld [vmem:[#allocation5 + $0x3c] sm:$0xf]
        %v318 = vunpack.c.l.b16 %v238
        %v319 = vunpack.c.l.b16 %v239
        %v320 = vunpack.c.l.b16 %v240
        %v321 = vunpack.c.l.b16 %v241
        %v322 = vunpack.c.l.b16 %v242
        %v323 = vunpack.c.l.b16 %v243
        %v324 = vunpack.c.l.b16 %v244
        %v325 = vunpack.c.l.b16 %v245
        %v326 = vunpack.c.l.b16 %v246
        %v327 = vunpack.c.l.b16 %v247
        %v328 = vunpack.c.l.b16 %v248
        %v329 = vunpack.c.l.b16 %v249
        %v330 = vunpack.c.l.b16 %v250
        %v331 = vunpack.c.l.b16 %v251
        %v332 = vunpack.c.l.b16 %v252
        %v333 = vunpack.c.l.b16 %v253
        %v334 = vunpack.c.l.b16 %v254
        %v335 = vunpack.c.l.b16 %v255
        %v336 = vunpack.c.l.b16 %v256
        %v337 = vunpack.c.l.b16 %v257
        %v338 = vunpack.c.l.b16 %v258
        %v339 = vunpack.c.l.b16 %v259
        %v340 = vunpack.c.l.b16 %v260
        %v341 = vunpack.c.l.b16 %v261
        %v342 = vunpack.c.l.b16 %v262
        %v343 = vunpack.c.l.b16 %v263
        %v344 = vunpack.c.l.b16 %v264
        %v345 = vunpack.c.l.b16 %v265
        %v346 = vunpack.c.l.b16 %v266
        %v347 = vunpack.c.l.b16 %v267
        %v348 = vunpack.c.l.b16 %v268
        %v349 = vunpack.c.l.b16 %v269
        %v350 = vpack.c.b16 %v319, %v318
        %v351 = vpack.c.b16 %v321, %v320
        %v352 = vpack.c.b16 %v323, %v322
        %v353 = vpack.c.b16 %v325, %v324
        %v354 = vpack.c.b16 %v327, %v326
        %v355 = vpack.c.b16 %v329, %v328
        %v356 = vpack.c.b16 %v331, %v330
        %v357 = vpack.c.b16 %v333, %v332
        %v358 = vpack.c.b16 %v335, %v334
        %v359 = vpack.c.b16 %v337, %v336
        %v360 = vpack.c.b16 %v339, %v338
        %v361 = vpack.c.b16 %v341, %v340
        %v362 = vpack.c.b16 %v343, %v342
        %v363 = vpack.c.b16 %v345, %v344
        %v364 = vpack.c.b16 %v347, %v346
        %v365 = vpack.c.b16 %v349, %v348
        %v398 = vunpack.c.l.b16 %v270
        %v399 = vunpack.c.l.b16 %v271
        %v400 = vunpack.c.l.b16 %v272
        %v401 = vunpack.c.l.b16 %v273
        %v402 = vunpack.c.l.b16 %v274
        %v403 = vunpack.c.l.b16 %v275
        %v404 = vunpack.c.l.b16 %v276
        %v405 = vunpack.c.l.b16 %v277
        %v406 = vunpack.c.l.b16 %v278
        %v407 = vunpack.c.l.b16 %v279
        %v408 = vunpack.c.l.b16 %v280
        %v409 = vunpack.c.l.b16 %v281
        %v410 = vunpack.c.l.b16 %v282
        %v411 = vunpack.c.l.b16 %v283
        %v412 = vunpack.c.l.b16 %v284
        %v413 = vunpack.c.l.b16 %v285
        %v414 = vpack.c.b16 %v399, %v398
        %v415 = vpack.c.b16 %v401, %v400
        %v416 = vpack.c.b16 %v403, %v402
        %v417 = vpack.c.b16 %v405, %v404
        %v418 = vpack.c.b16 %v407, %v406
        %v419 = vpack.c.b16 %v409, %v408
        %v420 = vpack.c.b16 %v411, %v410
        %v421 = vpack.c.b16 %v413, %v412
        %430 = vmatprep.subr.bf16.mxu0 0
        %431 = vmatpush1.bf16.msra.mxu0 %v414
        %432 = vmatprep.subr.bf16.mxu0 0
        %433 = vmatpush1.bf16.msra.mxu0 %v415
        %434 = vmatprep.subr.bf16.mxu0 0
        %435 = vmatpush1.bf16.msra.mxu0 %v416
        %436 = vmatprep.subr.bf16.mxu0 0
        %437 = vmatpush1.bf16.msra.mxu0 %v417
        %438 = vmatprep.subr.bf16.mxu0 0
        %439 = vmatpush1.bf16.msra.mxu0 %v418
        %440 = vmatprep.subr.bf16.mxu0 0
        %441 = vmatpush1.bf16.msra.mxu0 %v419
        %442 = vmatprep.subr.bf16.mxu0 0
        %443 = vmatpush1.bf16.msra.mxu0 %v420
        %444 = vmatprep.subr.bf16.mxu0 0
        %445 = vmatpush1.bf16.msra.mxu0 %v421
        %446 = vmatprep.subr.bf16.mxu0 0
        %447 = vmatpush1.bf16.msra.mxu0 0
        %448 = vmatprep.subr.bf16.mxu0 0
        %449 = vmatpush1.bf16.msra.mxu0 0
        %450 = vmatprep.subr.bf16.mxu0 0
        %451 = vmatpush1.bf16.msra.mxu0 0
        %452 = vmatprep.subr.bf16.mxu0 0
        %453 = vmatpush1.bf16.msra.mxu0 0
        %454 = vmatprep.subr.bf16.mxu0 0
        %455 = vmatpush1.bf16.msra.mxu0 0
        %456 = vmatprep.subr.bf16.mxu0 0
        %457 = vmatpush1.bf16.msra.mxu0 0
        %458 = vmatprep.subr.bf16.mxu0 0
        %459 = vmatpush1.bf16.msra.mxu0 0
        %460 = vmatprep.subr.bf16.mxu0 0
        %461 = vmatpush1.bf16.msra.mxu0 0
        %462 = vmatprep.mubr.bf16.mxu0 0
        %463 = vmatmul.mubr.bf16.gmra.mrb[0].mxu0 %v350
        %v464 = vpop.f32.mrb[0].mxu0
        %v465 = vadd.f32 0.0, %v464
        %v466 = vpop.f32.mrb[0].mxu0
        %v467 = vpop.f32.mrb[0].mxu0
        %v468 = vadd.f32 0.0, %v467
        %v469 = vpop.f32.mrb[0].mxu0
        %470 = vmatprep.mubr.bf16.mxu0 0
        %471 = vmatmul.mubr.bf16.gmra.mrb[0].mxu0 %v351
        %v472 = vpop.f32.mrb[0].mxu0
        %v473 = vadd.f32 0.0, %v472
        %v474 = vpop.f32.mrb[0].mxu0
        %v475 = vpop.f32.mrb[0].mxu0
        %v476 = vadd.f32 0.0, %v475
        %v477 = vpop.f32.mrb[0].mxu0
        %478 = vmatprep.mubr.bf16.mxu0 0
        %479 = vmatmul.mubr.bf16.gmra.mrb[0].mxu0 %v352
        %v480 = vpop.f32.mrb[0].mxu0
        %v481 = vadd.f32 0.0, %v480
        %v482 = vpop.f32.mrb[0].mxu0
        %v483 = vpop.f32.mrb[0].mxu0
        %v484 = vadd.f32 0.0, %v483
        %v485 = vpop.f32.mrb[0].mxu0
        %486 = vmatprep.mubr.bf16.mxu0 0
        %487 = vmatmul.mubr.bf16.gmra.mrb[0].mxu0 %v353
        %v488 = vpop.f32.mrb[0].mxu0
        %v489 = vadd.f32 0.0, %v488
        %v490 = vpop.f32.mrb[0].mxu0
        %v491 = vpop.f32.mrb[0].mxu0
        %v492 = vadd.f32 0.0, %v491
        %v493 = vpop.f32.mrb[0].mxu0
        %494 = vmatprep.mubr.bf16.mxu0 0
        %495 = vmatmul.mubr.bf16.gmra.mrb[0].mxu0 %v354
        %v496 = vpop.f32.mrb[0].mxu0
        %v497 = vadd.f32 0.0, %v496
        %v498 = vpop.f32.mrb[0].mxu0
        %v499 = vpop.f32.mrb[0].mxu0
        %v500 = vadd.f32 0.0, %v499
        %v501 = vpop.f32.mrb[0].mxu0
        %502 = vmatprep.mubr.bf16.mxu0 0
        %503 = vmatmul.mubr.bf16.gmra.mrb[0].mxu0 %v355
        %v504 = vpop.f32.mrb[0].mxu0
        %v505 = vadd.f32 0.0, %v504
        %v506 = vpop.f32.mrb[0].mxu0
        %v507 = vpop.f32.mrb[0].mxu0
        %v508 = vadd.f32 0.0, %v507
        %v509 = vpop.f32.mrb[0].mxu0
        %510 = vmatprep.mubr.bf16.mxu0 0
        %511 = vmatmul.mubr.bf16.gmra.mrb[0].mxu0 %v356
        %v512 = vpop.f32.mrb[0].mxu0
        %v513 = vadd.f32 0.0, %v512
        %v514 = vpop.f32.mrb[0].mxu0
        %v515 = vpop.f32.mrb[0].mxu0
        %v516 = vadd.f32 0.0, %v515
        %v517 = vpop.f32.mrb[0].mxu0
        %518 = vmatprep.mubr.bf16.mxu0 0
        %519 = vmatmul.mubr.bf16.gmra.mrb[0].mxu0 %v357
        %v520 = vpop.f32.mrb[0].mxu0
        %v521 = vadd.f32 0.0, %v520
        %v522 = vpop.f32.mrb[0].mxu0
        %v523 = vpop.f32.mrb[0].mxu0
        %v524 = vadd.f32 0.0, %v523
        %v525 = vpop.f32.mrb[0].mxu0
        %526 = vmatprep.mubr.bf16.mxu0 0
        %527 = vmatmul.mubr.bf16.gmra.mrb[0].mxu0 %v358
        %v528 = vpop.f32.mrb[0].mxu0
        %v529 = vadd.f32 0.0, %v528
        %v530 = vpop.f32.mrb[0].mxu0
        %v531 = vpop.f32.mrb[0].mxu0
        %v532 = vadd.f32 0.0, %v531
        %v533 = vpop.f32.mrb[0].mxu0
        %534 = vmatprep.mubr.bf16.mxu0 0
        %535 = vmatmul.mubr.bf16.gmra.mrb[0].mxu0 %v359
        %v536 = vpop.f32.mrb[0].mxu0
        %v537 = vadd.f32 0.0, %v536
        %v538 = vpop.f32.mrb[0].mxu0
        %v539 = vpop.f32.mrb[0].mxu0
        %v540 = vadd.f32 0.0, %v539
        %v541 = vpop.f32.mrb[0].mxu0
        %542 = vmatprep.mubr.bf16.mxu0 0
        %543 = vmatmul.mubr.bf16.gmra.mrb[0].mxu0 %v360
        %v544 = vpop.f32.mrb[0].mxu0
        %v545 = vadd.f32 0.0, %v544
        %v546 = vpop.f32.mrb[0].mxu0
        %v547 = vpop.f32.mrb[0].mxu0
        %v548 = vadd.f32 0.0, %v547
        %v549 = vpop.f32.mrb[0].mxu0
        %550 = vmatprep.mubr.bf16.mxu0 0
        %551 = vmatmul.mubr.bf16.gmra.mrb[0].mxu0 %v361
        %v552 = vpop.f32.mrb[0].mxu0
        %v553 = vadd.f32 0.0, %v552
        %v554 = vpop.f32.mrb[0].mxu0
        %v555 = vpop.f32.mrb[0].mxu0
        %v556 = vadd.f32 0.0, %v555
        %v557 = vpop.f32.mrb[0].mxu0
        %558 = vmatprep.mubr.bf16.mxu0 0
        %559 = vmatmul.mubr.bf16.gmra.mrb[0].mxu0 %v362
        %v560 = vpop.f32.mrb[0].mxu0
        %v561 = vadd.f32 0.0, %v560
        %v562 = vpop.f32.mrb[0].mxu0
        %v563 = vpop.f32.mrb[0].mxu0
        %v564 = vadd.f32 0.0, %v563
        %v565 = vpop.f32.mrb[0].mxu0
        %566 = vmatprep.mubr.bf16.mxu0 0
        %567 = vmatmul.mubr.bf16.gmra.mrb[0].mxu0 %v363
        %v568 = vpop.f32.mrb[0].mxu0
        %v569 = vadd.f32 0.0, %v568
        %v570 = vpop.f32.mrb[0].mxu0
        %v571 = vpop.f32.mrb[0].mxu0
        %v572 = vadd.f32 0.0, %v571
        %v573 = vpop.f32.mrb[0].mxu0
        %574 = vmatprep.mubr.bf16.mxu0 0
        %575 = vmatmul.mubr.bf16.gmra.mrb[0].mxu0 %v364
        %v576 = vpop.f32.mrb[0].mxu0
        %v577 = vadd.f32 0.0, %v576
        %v578 = vpop.f32.mrb[0].mxu0
        %v579 = vpop.f32.mrb[0].mxu0
        %v580 = vadd.f32 0.0, %v579
        %v581 = vpop.f32.mrb[0].mxu0
        %582 = vmatprep.mubr.bf16.mxu0 0
        %583 = vmatmul.mubr.bf16.gmra.mrb[0].mxu0 %v365
        %v584 = vpop.f32.mrb[0].mxu0
        %v585 = vadd.f32 0.0, %v584
        %v586 = vpop.f32.mrb[0].mxu0
        %v587 = vpop.f32.mrb[0].mxu0
        %v588 = vadd.f32 0.0, %v587
        %v589 = vpop.f32.mrb[0].mxu0
        %590 = vdwg.mxu0
        %v591 = vadd.f32 %v465, %v468
        %v592 = vadd.f32 %v591, %v473
        %v593 = vadd.f32 %v592, %v476
        %v594 = vadd.f32 %v593, %v481
        %v595 = vadd.f32 %v594, %v484
        %v596 = vadd.f32 %v595, %v489
        %v597 = vadd.f32 %v596, %v492
        %v598 = vadd.f32 %v597, %v497
        %v599 = vadd.f32 %v598, %v500
        %v600 = vadd.f32 %v599, %v505
        %v601 = vadd.f32 %v600, %v508
        %v602 = vadd.f32 %v601, %v513
        %v603 = vadd.f32 %v602, %v516
        %v604 = vadd.f32 %v603, %v521
        %v605 = vadd.f32 %v604, %v524
        %v606 = vadd.f32 %v605, %v529
        %v607 = vadd.f32 %v606, %v532
        %v608 = vadd.f32 %v607, %v537
        %v609 = vadd.f32 %v608, %v540
        %v610 = vadd.f32 %v609, %v545
        %v611 = vadd.f32 %v610, %v548
        %v612 = vadd.f32 %v611, %v553
        %v613 = vadd.f32 %v612, %v556
        %v614 = vadd.f32 %v613, %v561
        %v615 = vadd.f32 %v614, %v564
        %v616 = vadd.f32 %v615, %v569
        %v617 = vadd.f32 %v616, %v572
        %v618 = vadd.f32 %v617, %v577
        %v619 = vadd.f32 %v618, %v580
        %v620 = vadd.f32 %v619, %v585
        %v621 = vadd.f32 %v620, %v588
        %v622 = vrot.slane %v621, 4
        %v623 = vadd.f32 %v621, %v622
        %v624 = vrot.slane %v623, 2
        %v625 = vadd.f32 %v623, %v624
        %v626 = vrot.slane %v625, 1
        %v627 = vadd.f32 %v625, %v626
        %v628 = vmul.f32 %v465, %v465
        %v629 = vmul.f32 %v468, %v468
        %v630 = vmul.f32 %v473, %v473
        %v631 = vmul.f32 %v476, %v476
        %v632 = vmul.f32 %v481, %v481
        %v633 = vmul.f32 %v484, %v484
        %v634 = vmul.f32 %v489, %v489
        %v635 = vmul.f32 %v492, %v492
        %v636 = vmul.f32 %v497, %v497
        %v637 = vmul.f32 %v500, %v500
        %v638 = vmul.f32 %v505, %v505
        %v639 = vmul.f32 %v508, %v508
        %v640 = vmul.f32 %v513, %v513
        %v641 = vmul.f32 %v516, %v516
        %v642 = vmul.f32 %v521, %v521
        %v643 = vmul.f32 %v524, %v524
        %v644 = vmul.f32 %v529, %v529
        %v645 = vmul.f32 %v532, %v532
        %v646 = vmul.f32 %v537, %v537
        %v647 = vmul.f32 %v540, %v540
        %v648 = vmul.f32 %v545, %v545
        %v649 = vmul.f32 %v548, %v548
        %v650 = vmul.f32 %v553, %v553
        %v651 = vmul.f32 %v556, %v556
        %v652 = vmul.f32 %v561, %v561
        %v653 = vmul.f32 %v564, %v564
        %v654 = vmul.f32 %v569, %v569
        %v655 = vmul.f32 %v572, %v572
        %v656 = vmul.f32 %v577, %v577
        %v657 = vmul.f32 %v580, %v580
        %v658 = vmul.f32 %v585, %v585
        %v659 = vmul.f32 %v588, %v588
        %v660 = vadd.f32 %v628, %v629
        %v661 = vadd.f32 %v660, %v630
        %v662 = vadd.f32 %v661, %v631
        %v663 = vadd.f32 %v662, %v632
        %v664 = vadd.f32 %v663, %v633
        %v665 = vadd.f32 %v664, %v634
        %v666 = vadd.f32 %v665, %v635
        %v667 = vadd.f32 %v666, %v636
        %v668 = vadd.f32 %v667, %v637
        %v669 = vadd.f32 %v668, %v638
        %v670 = vadd.f32 %v669, %v639
        %v671 = vadd.f32 %v670, %v640
        %v672 = vadd.f32 %v671, %v641
        %v673 = vadd.f32 %v672, %v642
        %v674 = vadd.f32 %v673, %v643
        %v675 = vadd.f32 %v674, %v644
        %v676 = vadd.f32 %v675, %v645
        %v677 = vadd.f32 %v676, %v646
        %v678 = vadd.f32 %v677, %v647
        %v679 = vadd.f32 %v678, %v648
        %v680 = vadd.f32 %v679, %v649
        %v681 = vadd.f32 %v680, %v650
        %v682 = vadd.f32 %v681, %v651
        %v683 = vadd.f32 %v682, %v652
        %v684 = vadd.f32 %v683, %v653
        %v685 = vadd.f32 %v684, %v654
        %v686 = vadd.f32 %v685, %v655
        %v687 = vadd.f32 %v686, %v656
        %v688 = vadd.f32 %v687, %v657
        %v689 = vadd.f32 %v688, %v658
        %v690 = vadd.f32 %v689, %v659
        %v691 = vrot.slane %v690, 4
        %v692 = vadd.f32 %v690, %v691
        %v693 = vrot.slane %v692, 2
        %v694 = vadd.f32 %v692, %v693
        %v695 = vrot.slane %v694, 1
        %v696 = vadd.f32 %v694, %v695
        %vm697 = vcmask 1040384
        %v698 = vsel %vm697, %v627, %v696
        %699 = vst [vmem:[%s234] sm:$0x3] %v698
        %700 = vxpose.xlu0.b32.start [1/16] %v465, 128
        %701 = vxpose.xlu0.b32.cont [2/16] %v468, 128
        %702 = vxpose.xlu0.b32.cont [3/16] %v473, 128
        %703 = vxpose.xlu0.b32.cont [4/16] %v476, 128
        %704 = vxpose.xlu0.b32.cont [5/16] %v481, 128
        %705 = vxpose.xlu0.b32.cont [6/16] %v484, 128
        %706 = vxpose.xlu0.b32.cont [7/16] %v489, 128
        %707 = vxpose.xlu0.b32.cont [8/16] %v492, 128
        %708 = vxpose.xlu0.b32.cont [9/16] %v497, 128
        %709 = vxpose.xlu0.b32.cont [10/16] %v500, 128
        %710 = vxpose.xlu0.b32.cont [11/16] %v505, 128
        %711 = vxpose.xlu0.b32.cont [12/16] %v508, 128
        %712 = vxpose.xlu0.b32.cont [13/16] %v513, 128
        %713 = vxpose.xlu0.b32.cont [14/16] %v516, 128
        %714 = vxpose.xlu0.b32.cont [15/16] %v521, 128
        %715 = vxpose.xlu0.b32.end [16/16] %v524, 128
        %v716 = vpop.trf.xlu0
        %v717 = vpop.trf.xlu0
        %v718 = vpop.trf.xlu0
        %v719 = vpop.trf.xlu0
        %v720 = vpop.trf.xlu0
        %v721 = vpop.trf.xlu0
        %v722 = vpop.trf.xlu0
        %v723 = vpop.trf.xlu0
        %v724 = vpop.trf.xlu0
        %v725 = vpop.trf.xlu0
        %v726 = vpop.trf.xlu0
        %v727 = vpop.trf.xlu0
        %v728 = vpop.trf.xlu0
        %v729 = vpop.trf.xlu0
        %v730 = vpop.trf.xlu0
        %v731 = vpop.trf.xlu0
        %732 = vxpose.xlu0.b32.start [1/16] %v529, 128
        %733 = vxpose.xlu0.b32.cont [2/16] %v532, 128
        %734 = vxpose.xlu0.b32.cont [3/16] %v537, 128
        %735 = vxpose.xlu0.b32.cont [4/16] %v540, 128
        %736 = vxpose.xlu0.b32.cont [5/16] %v545, 128
        %737 = vxpose.xlu0.b32.cont [6/16] %v548, 128
        %738 = vxpose.xlu0.b32.cont [7/16] %v553, 128
        %739 = vxpose.xlu0.b32.cont [8/16] %v556, 128
        %740 = vxpose.xlu0.b32.cont [9/16] %v561, 128
        %741 = vxpose.xlu0.b32.cont [10/16] %v564, 128
        %742 = vxpose.xlu0.b32.cont [11/16] %v569, 128
        %743 = vxpose.xlu0.b32.cont [12/16] %v572, 128
        %744 = vxpose.xlu0.b32.cont [13/16] %v577, 128
        %745 = vxpose.xlu0.b32.cont [14/16] %v580, 128
        %746 = vxpose.xlu0.b32.cont [15/16] %v585, 128
        %747 = vxpose.xlu0.b32.end [16/16] %v588, 128
        %v748 = vpop.trf.xlu0
        %v749 = vpop.trf.xlu0
        %v750 = vpop.trf.xlu0
        %v751 = vpop.trf.xlu0
        %v752 = vpop.trf.xlu0
        %v753 = vpop.trf.xlu0
        %v754 = vpop.trf.xlu0
        %v755 = vpop.trf.xlu0
        %v756 = vpop.trf.xlu0
        %v757 = vpop.trf.xlu0
        %v758 = vpop.trf.xlu0
        %v759 = vpop.trf.xlu0
        %v760 = vpop.trf.xlu0
        %v761 = vpop.trf.xlu0
        %v762 = vpop.trf.xlu0
        %v763 = vpop.trf.xlu0
        %v764 = vpack.c.bf16 %v716, %v716
        %v765 = vpack.c.bf16 %v748, %v748
        %v768 = vunpack.c.l.b16 %v764
        %v769 = vunpack.c.l.b16 %v765
        %v770 = vpack.c.b16 %v769, %v768
        %772 = vst [vmem:[%s227] sm:$0xff] %v770
        %s773 = sand.u32 %s96, 1
        %s774 = scalar_lea.sflag [#allocation4], %s773
        %s775 = sand.u32 %s96, 1
        %s776 = smul.addr %s775, 8
        %s777 = scalar_lea.vmem [#allocation7], %s776
        %s778 = sand.u32 %s124, 1
        %s779 = scalar_lea.sflag [#allocation9], %s778
        %s780 = sand.u32 %s124, 1
        %s781 = smul.addr %s780, 2
        %s782 = scalar_lea.vmem [#allocation8], %s781
        // Predicated region
        $region37: #{tpu_custom_call.1} parent=27 // pred_check
          %p783 = pneg %p106
        $region38: #{tpu_custom_call.1} parent=27 // pred_check_branch
          %785 = sbr.rel (%p783) target = $region40
        $region39: #{tpu_custom_call.1} parent=27 // pred_region
          %s786 = smul.u32 2, %s30
          %s788 = ssub.s32 128, 128
          %789 = vsyncadd %s774, %s788
          %s790 = smul.addr %s29, 2
          %s791 = sadd.s32 %s786, %s790
          %s792 = smul.addr %s791, 64
          %s793 = scalar_lea.hbm %s2, %s792
          %s795 = sshll.u32 %s777, 4
          %s796 = int_to_ptr.vmem [resolvable:$true] %s795
          %798 = dma.vmem_to_hbm [thread:$0]  %s796, 128, %s793, %s774
        $region40: #{tpu_custom_call.1} parent=27 // pred_fallthru
          _
        // Predicated region
        $region41: #{tpu_custom_call.1} parent=27 // pred_check
          %p799 = pneg %p134
        $region42: #{tpu_custom_call.1} parent=27 // pred_check_branch
          %801 = sbr.rel (%p799) target = $region44
        $region43: #{tpu_custom_call.1} parent=27 // pred_region
          %s803 = ssub.s32 32, 32
          %804 = vsyncadd %s779, %s803
          %s805 = sadd.s32 %s30, %s29
          %s806 = smul.addr %s805, 32
          %s807 = scalar_lea.hbm %s3, %s806
          %s809 = sshll.u32 %s782, 4
          %s810 = int_to_ptr.vmem [resolvable:$true] %s809
          %812 = dma.vmem_to_hbm [thread:$0]  %s810, 32, %s807, %s779
        $region44: #{tpu_custom_call.1} parent=27 // pred_fallthru
          _
      $region28: #{tpu_custom_call.1} parent=5 // pred_fallthru
        _
      %p813 = scmp.le.s32.totalorder 2, %s20
      // Predicated region
      $region45: #{tpu_custom_call.1} parent=5 // pred_check
        %p814 = pneg %p813
      $region46: #{tpu_custom_call.1} parent=5 // pred_check_branch
        %816 = sbr.rel (%p814) target = $region48
      $region47: #{tpu_custom_call.1} parent=5 // pred_region
        %s817 = ssub.s32 %s20, 2
        // Predicated region
        $region49: #{tpu_custom_call.1} parent=47 // pred_check
          %p818 = pneg %p112
        $region50: #{tpu_custom_call.1} parent=47 // pred_check_branch
          %820 = sbr.rel (%p818) target = $region52
        $region51: #{tpu_custom_call.1} parent=47 // pred_region
          %s821 = sand.u32 %s97, 1
          %s822 = scalar_lea.sflag [#allocation4], %s821
          %s823 = sand.u32 %s97, 1
          %s824 = smul.addr %s823, 8
          %s825 = scalar_lea.vmem [#allocation7], %s824
          %826 = dma.done %s822, 128
        $region52: #{tpu_custom_call.1} parent=47 // pred_fallthru
          _
        // Predicated region
        $region53: #{tpu_custom_call.1} parent=47 // pred_check
          %p827 = pneg %p140
        $region54: #{tpu_custom_call.1} parent=47 // pred_check_branch
          %829 = sbr.rel (%p827) target = $region56
        $region55: #{tpu_custom_call.1} parent=47 // pred_region
          %s830 = sand.u32 %s125, 1
          %s831 = scalar_lea.sflag [#allocation9], %s830
          %s832 = sand.u32 %s125, 1
          %s833 = smul.addr %s832, 2
          %s834 = scalar_lea.vmem [#allocation8], %s833
          %835 = dma.done %s831, 32
        $region56: #{tpu_custom_call.1} parent=47 // pred_fallthru
          _
      $region48: #{tpu_custom_call.1} parent=5 // pred_fallthru
        _
    $region6: #{tpu_custom_call.1} parent=1 // loop_footer
      %s24 = sadd.s32 1, %s20
    $region7: #{tpu_custom_call.1} parent=1 // loop_footer_branch
      %19 = sbr.rel target = $region3
    $region8: #{tpu_custom_call.1} parent=1 // loop_exit
      _
    %836 = vsyncpa [#allocation3], 1
    %s837 = scalar_lea.sflag [#allocation3], 1
    %838 = vsyncpa %s837, 1
    %839 = vsyncpa [#allocation6], 1
    %840 = vsyncpa [#allocation4], 1
    %s841 = scalar_lea.sflag [#allocation4], 1
    %842 = vsyncpa %s841, 1
    %843 = vsyncpa [#allocation9], 1
    %s844 = scalar_lea.sflag [#allocation9], 1
    %845 = vsyncpa %s844, 1

</llo_original>
